<compile_context>
chip_gen: v5e
topology: v5e:2x2
jax: 0.10.0
libtpu: 0.0.40
codegen_flags: <defaults>
</compile_context>

<pallas_src>
import jax
import jax.numpy as jnp
from jax.experimental import pallas as pl
from jax.experimental.pallas import tpu as pltpu


# ----------------------------------------------------------------------------
# Kernel
# ----------------------------------------------------------------------------
def _group_all_kernel(xyz_ref, feat_ref, out_ref):
    # xyz_ref : (bt, 3,   nt)   lane-dense (N on lanes; transpose done outside)
    # feat_ref: (bt, C,   nt)
    # out_ref : (bt, C+3, nt)
    # Two direct region stores; no concatenated intermediate.
    out_ref[:, :3, :] = xyz_ref[...].astype(out_ref.dtype)
    out_ref[:, 3:, :] = feat_ref[...].astype(out_ref.dtype)


# ----------------------------------------------------------------------------
# Tiling / budget helpers
# ----------------------------------------------------------------------------
def _round_up(x, m):
    return ((x + m - 1) // m) * m


def _sublane_multiple(dtype):
    # f32 -> 8 rows, bf16 -> 16, int8/fp8 -> 32.
    return max(8, 32 // jnp.dtype(dtype).itemsize)


def _per_step_vmem_bytes(bt, nt, C, xyz_dt, feat_dt, out_dt):
    """Double-buffered VMEM footprint of one grid step (sublane-padded rows)."""
    total = 0
    for rows, dt in ((3, xyz_dt), (C, feat_dt), (C + 3, out_dt)):
        dt = jnp.dtype(dt)
        total += bt * _round_up(rows, _sublane_multiple(dt)) * nt * dt.itemsize
    return 2 * total  # default double buffering of every blocked operand


def _largest_divisor_leq(n, cap):
    cap = max(1, min(cap, n))
    for d in range(cap, 0, -1):
        if n % d == 0:
            return d
    return 1


def _tpu_params():
    """(per-core VMEM capacity bytes, TensorCore count), with safe fallbacks."""
    vmem_cap = 128 << 20
    num_tc = 0
    try:
        info = pltpu.get_tpu_info()
        cap = getattr(info, "vmem_capacity_bytes", None)
        if cap:
            vmem_cap = int(cap)
        for attr in ("num_cores", "core_count", "num_tensorcores"):
            v = getattr(info, attr, None)
            if v:
                num_tc = int(v)
                break
    except Exception:
        pass
    if num_tc <= 0:
        # Heuristic: v7x-class parts expose <= 64 MiB VMEM per TensorCore and
        # carry 2 TCs per chip; v5e/v6e expose 128 MiB and have 1 TC.
        num_tc = 2 if vmem_cap <= (64 << 20) else 1
    return vmem_cap, num_tc


def _choose_tiles(B, C, Np, xyz_dt, feat_dt, out_dt, budget, num_tc):
    """Pick (batch tile bt, lane tile nt) fitting `budget`, padding-aware."""

    def step_bytes(bt, nt):
        return _per_step_vmem_bytes(bt, nt, C, xyz_dt, feat_dt, out_dt)

    # Only force a split on multi-TC chips (v7x); aim for >= 2 steps per core.
    if num_tc > 1 and B > 1:
        target_steps = min(2 * num_tc, B)
        bt_cap = max(1, B // target_steps)
    else:
        bt_cap = B

    one_batch = step_bytes(1, Np)
    if one_batch <= budget:
        bt_budget = max(1, budget // one_batch)
        bt = _largest_divisor_leq(B, min(int(bt_budget), bt_cap))
        nt = Np
    else:
        # Fallback: a single batch slab does not fit -> tile N in 128-lane
        # multiples (stores stay lane-dense and unmasked).
        bt = 1
        nt = 128
        t = 128
        while t <= Np:
            if Np % t == 0 and step_bytes(1, t) <= budget:
                nt = t
            t += 128
        # TODO(synk): if even a (1, C, 128) slab overflows VMEM (enormous C),
        # a C-tiling axis would be needed; not implemented here.

    # On multi-TC chips make sure there is something to split across cores.
    total_steps = (B // bt) * (Np // nt)
    if num_tc > 1 and total_steps < 2 * num_tc:
        want_n_blocks = -(-2 * num_tc // (B // bt))  # ceil
        best = nt
        t = 128
        while t <= Np:
            if Np % t == 0 and (Np // t) >= want_n_blocks:
                best = t  # keep the largest tile still giving enough blocks
            t += 128
        nt = best

    return bt, nt


# ----------------------------------------------------------------------------
# Wrapper
# ----------------------------------------------------------------------------
def _group_all_fused(xyz, features):
    """xyz: (B, N, 3), features: (B, C, N) -> (B, C+3, 1, N) via Pallas."""
    B, N, _ = xyz.shape
    _, C, _ = features.shape
    out_dtype = jnp.result_type(xyz.dtype, features.dtype)

    # Lane-dense xyz layout (N on lanes); the (B, 3, N) slab is tiny next to
    # the feature slab.
    xyz_t = jnp.transpose(xyz, (0, 2, 1))  # (B, 3, N)

    # Keep the big output stores unmasked & lane-dense: pad N to a multiple of
    # 128 and slice back afterwards (rare path; typical N is 128-aligned).
    Np = _round_up(N, 128)
    if Np != N:
        pad = Np - N
        xyz_t = jnp.pad(xyz_t, ((0, 0), (0, 0), (0, pad)))
        features = jnp.pad(features, ((0, 0), (0, 0), (0, pad)))

    vmem_cap, num_tc = _tpu_params()
    budget = int(vmem_cap * 0.45)
    bt, nt = _choose_tiles(B, C, Np, xyz_t.dtype, features.dtype, out_dtype,
                           budget, num_tc)

    need = _per_step_vmem_bytes(bt, nt, C, xyz_t.dtype, features.dtype, out_dtype)
    vmem_limit = max(need + (8 << 20), vmem_cap // 2)
    vmem_limit = int(min(vmem_limit, vmem_cap - (4 << 20)))

    bytes_accessed = int(
        xyz_t.size * xyz_t.dtype.itemsize
        + features.size * features.dtype.itemsize
        + B * (C + 3) * Np * jnp.dtype(out_dtype).itemsize
    )

    out = pl.pallas_call(
        _group_all_kernel,
        out_shape=jax.ShapeDtypeStruct((B, C + 3, Np), out_dtype),
        grid=(B // bt, Np // nt),
        in_specs=[
            pl.BlockSpec((bt, 3, nt), lambda b, n: (b, 0, n)),
            pl.BlockSpec((bt, C, nt), lambda b, n: (b, 0, n)),
        ],
        out_specs=pl.BlockSpec((bt, C + 3, nt), lambda b, n: (b, 0, n)),
        compiler_params=pltpu.CompilerParams(
            dimension_semantics=("parallel", "parallel"),
            vmem_limit_bytes=vmem_limit,
        ),
        cost_estimate=pl.CostEstimate(
            flops=0, transcendentals=0, bytes_accessed=bytes_accessed
        ),
    )(xyz_t, features)

    if Np != N:
        out = out[:, :, :N]
    return out.reshape(B, C + 3, 1, N)


def group_all(xyz, new_xyz=None, features=None, use_xyz=True,
              ret_grouped_xyz=False):
    """GroupAll forward.

    xyz: (B, N, 3); new_xyz is ignored (matches the PyTorch module);
    features: (B, C, N) or None.
    Returns (B, C+3, 1, N) / (B, C, 1, N) / (B, 3, 1, N).
    """
    del new_xyz  # ignored, as in the reference module
    B, N, _ = xyz.shape

    grouped_xyz = None
    if ret_grouped_xyz or features is None:
        grouped_xyz = jnp.transpose(xyz, (0, 2, 1))[:, :, None, :]

    if features is None:
        new_features = grouped_xyz                      # pure layout change
    elif not use_xyz:
        new_features = features[:, :, None, :]          # pure unsqueeze
    else:
        new_features = _group_all_fused(xyz, features)  # Pallas fused concat

    if ret_grouped_xyz:
        return new_features, grouped_xyz
    return new_features


def group_all_ref(xyz, features=None, use_xyz=True):
    grouped_xyz = jnp.transpose(xyz, (0, 2, 1))[:, :, None, :]
    if features is None:
        return grouped_xyz
    grouped_features = features[:, :, None, :]
    if use_xyz:
        return jnp.concatenate([grouped_xyz, grouped_features], axis=1)
    return grouped_features


# ----------------------------------------------------------------------------
# Self-test
# ----------------------------------------------------------------------------
if __name__ == "__main__":
    key = jax.random.PRNGKey(0)
    k1, k2, k3, k4 = jax.random.split(key, 4)

    # Aligned case: N multiple of 128 -> unmasked lane-dense stores.
    B, N, C = 4, 128, 8
    xyz = jax.random.normal(k1, (B, N, 3), dtype=jnp.float32)
    feats = jax.random.normal(k2, (B, C, N), dtype=jnp.float32)

    out = jax.block_until_ready(group_all(xyz, None, feats, use_xyz=True))
    ref = group_all_ref(xyz, feats, use_xyz=True)
    assert out.shape == (B, C + 3, 1, N), out.shape
    assert jnp.allclose(out, ref, atol=1e-6), "mismatch (aligned, use_xyz=True)"

    # Ragged-N case: wrapper pads to 128 lanes and slices back.
    B2, N2, C2 = 2, 96, 5
    xyz2 = jax.random.normal(k3, (B2, N2, 3), dtype=jnp.float32)
    feats2 = jax.random.normal(k4, (B2, C2, N2), dtype=jnp.float32)
    out2 = jax.block_until_ready(group_all(xyz2, None, feats2))
    assert out2.shape == (B2, C2 + 3, 1, N2), out2.shape
    assert jnp.allclose(out2, group_all_ref(xyz2, feats2), atol=1e-6), \
        "mismatch (ragged N)"

    # Wrapper-only paths (pure reshapes, no kernel).
    out_no_feat = jax.block_until_ready(group_all(xyz, None, None))
    assert jnp.allclose(out_no_feat, group_all_ref(xyz, None), atol=1e-6)

    out_no_xyz = jax.block_until_ready(group_all(xyz, None, feats, use_xyz=False))
    assert jnp.allclose(out_no_xyz, group_all_ref(xyz, feats, use_xyz=False),
                        atol=1e-6)

    # ret_grouped_xyz path.
    nf, gx = group_all(xyz, None, feats, use_xyz=True, ret_grouped_xyz=True)
    nf = jax.block_until_ready(nf)
    assert jnp.allclose(nf, ref, atol=1e-6)
    assert jnp.allclose(gx, jnp.transpose(xyz, (0, 2, 1))[:, :, None, :],
                        atol=1e-6)

    print("KERNEL_OK")
</pallas_src>

<mosaic_0001>
module attributes {stable_mosaic.version = 11 : i64} {
  func.func @_group_all_kernel(%arg0: i32, %arg1: i32, %arg2: memref<4x3x128xf32, #tpu.memory_space<vmem>>, %arg3: memref<4x8x128xf32, #tpu.memory_space<vmem>>, %arg4: memref<4x11x128xf32, #tpu.memory_space<vmem>>) attributes {dimension_semantics = [#tpu.dimension_semantics<parallel>, #tpu.dimension_semantics<parallel>], iteration_bounds = array<i64: 1, 1>, scalar_prefetch = 0 : i64, scratch_operands = 0 : i64, tpu.core_type = #tpu.core_type<tc>, window_params = [{transform_indices = @transform_0, window_bounds = array<i64: 4, 3, 128>}, {transform_indices = @transform_1, window_bounds = array<i64: 4, 8, 128>}, {transform_indices = @transform_2, window_bounds = array<i64: 4, 11, 128>}]} {
    %c0 = arith.constant 0 : index
    %c0_0 = arith.constant 0 : index
    %c0_1 = arith.constant 0 : index
    %0 = vector.load %arg2[%c0, %c0_0, %c0_1] : memref<4x3x128xf32, #tpu.memory_space<vmem>>, vector<4x3x128xf32>
    %c0_2 = arith.constant 0 : index
    %c0_3 = arith.constant 0 : index
    %c0_4 = arith.constant 0 : index
    %1 = vector.load %arg4[%c0_2, %c0_3, %c0_4] : memref<4x11x128xf32, #tpu.memory_space<vmem>>, vector<4x3x128xf32>
    tpu.vector_store %arg4[%c0_2, %c0_3, %c0_4], %0 {strides = array<i32>} : memref<4x11x128xf32, #tpu.memory_space<vmem>>, vector<4x3x128xf32>,
    %c0_5 = arith.constant 0 : index
    %c0_6 = arith.constant 0 : index
    %c0_7 = arith.constant 0 : index
    %2 = vector.load %arg3[%c0_5, %c0_6, %c0_7] : memref<4x8x128xf32, #tpu.memory_space<vmem>>, vector<4x8x128xf32>
    %c0_8 = arith.constant 0 : index
    %c3 = arith.constant 3 : index
    %c0_9 = arith.constant 0 : index
    %3 = vector.load %arg4[%c0_8, %c3, %c0_9] : memref<4x11x128xf32, #tpu.memory_space<vmem>>, vector<4x8x128xf32>
    tpu.vector_store %arg4[%c0_8, %c3, %c0_9], %2 {strides = array<i32>} : memref<4x11x128xf32, #tpu.memory_space<vmem>>, vector<4x8x128xf32>,
    return
  }
  func.func @transform_0(%arg0: i32, %arg1: i32) -> (i32, i32, i32) {
    %c0_i32 = arith.constant 0 : i32
    %c0_i32_0 = arith.constant 0 : i32
    return %arg0, %c0_i32, %arg1 : i32, i32, i32
  }
  func.func @transform_1(%arg0: i32, %arg1: i32) -> (i32, i32, i32) {
    %c0_i32 = arith.constant 0 : i32
    %c0_i32_0 = arith.constant 0 : i32
    return %arg0, %c0_i32, %arg1 : i32, i32, i32
  }
  func.func @transform_2(%arg0: i32, %arg1: i32) -> (i32, i32, i32) {
    %c0_i32 = arith.constant 0 : i32
    %c0_i32_0 = arith.constant 0 : i32
    return %arg0, %c0_i32, %arg1 : i32, i32, i32
  }
}

</mosaic_0001>

<llo_original>
// kernel: tpu_custom_call.1
$region0: #{tpu_custom_call.1}
  #allocation0 [shape = 'u32[]', space=smem, size = 0x4, offset = 0x4, fixed_abs, tag = 'smem constant byte address 0x4 - core index']
  #allocation1 [shape = 'u32[72,128]{1,0:T(1,128)}', space=vmem, size = 0x9000, scoped, tag = 'internal scratch']
  %s0 = inlined_call_operand.vmem [shape: f32[4,3,128], index: 0, kind: input, shape index: {}]
  %s1 = inlined_call_operand.hbm [shape: f32[4,8,128], index: 1, kind: input, shape index: {}]
  %s2 = inlined_call_operand.vmem [shape: f32[4,11,128], index: 2, kind: output, shape index: {}]
  %s3 = sld [smem:[#allocation0]]
  $region22: #{tpu_custom_call.1} parent=0
    _
  %s5 = ssub.s32 1, %s3
  %s6 = scalar_select 0, %s5, %s3
  $region1: #{tpu_custom_call.1} parent=0
    #allocation2 [shape = 'u8[16384]{0}', space=vmem, size = 0x4000, scoped, tag = 'input window, operand 1, single buffered']
    #allocation3 [shape = 's32[1]{0}', space=sflag, size = 0x4, scoped, tag = 'scoped memory for tpu_custom_call.1']
    %7 = vsyncpa [#allocation3], 0
    // Predicated region
    $region2: #{tpu_custom_call.1} parent=1 // pred_check
      _
    $region3: #{tpu_custom_call.1} parent=1 // pred_check_branch
      %9 = sbr.rel (0) target = $region5
    $region4: #{tpu_custom_call.1} parent=1 // pred_region
      _
    $region5: #{tpu_custom_call.1} parent=1 // pred_fallthru
      _
    // Predicated region
    $region6: #{tpu_custom_call.1} parent=1 // pred_check
      _
    $region7: #{tpu_custom_call.1} parent=1 // pred_check_branch
      %11 = sbr.rel (0) target = $region9
    $region8: #{tpu_custom_call.1} parent=1 // pred_region
      %13 = vsyncadd [#allocation3], 0
      %s14 = sshll.u32 %s1, 4
      %s15 = int_to_ptr.hbm [resolvable:$true] %s14
      %s16 = sshll.u32 [#allocation2], 4
      %s17 = int_to_ptr.vmem [resolvable:$true] %s16
      %22 = dma.hbm_to_vmem [thread:$0]  %s15, 512, %s17, [#allocation3], 128, 128, 8
    $region9: #{tpu_custom_call.1} parent=1 // pred_fallthru
      _
    // Predicated region
    $region10: #{tpu_custom_call.1} parent=1 // pred_check
      _
    $region11: #{tpu_custom_call.1} parent=1 // pred_check_branch
      %24 = sbr.rel (0) target = $region13
    $region12: #{tpu_custom_call.1} parent=1 // pred_region
      %26 = dma.done [#allocation3], 512
    $region13: #{tpu_custom_call.1} parent=1 // pred_fallthru
      _
    %v27 = vld [vmem:[%s0] sm:$0x7]
    %v28 = vld [vmem:[%s0 + $0x4] sm:$0x7]
    %v29 = vld [vmem:[%s0 + $0x8] sm:$0x7]
    %v30 = vld [vmem:[%s0 + $0xc] sm:$0x7]
    %31 = vst [vmem:[%s2] sm:$0x7] %v27
    %32 = vst [vmem:[%s2 + $0x10] sm:$0x7] %v28
    %33 = vst [vmem:[%s2 + $0x20] sm:$0x7] %v29
    %34 = vst [vmem:[%s2 + $0x30] sm:$0x7] %v30
    %v35 = vld [vmem:[#allocation2] sm:$0xff]
    %v36 = vld [vmem:[#allocation2 + $0x8] sm:$0xff]
    %v37 = vld [vmem:[#allocation2 + $0x10] sm:$0xff]
    %v38 = vld [vmem:[#allocation2 + $0x18] sm:$0xff]
    %39 = vst [vmem:[%s2 + $0x3] sm:$0xff] %v35
    %40 = vst [vmem:[%s2 + $0x13] sm:$0xff] %v36
    %41 = vst [vmem:[%s2 + $0x23] sm:$0xff] %v37
    %42 = vst [vmem:[%s2 + $0x33] sm:$0xff] %v38
    // Predicated region
    $region14: #{tpu_custom_call.1} parent=1 // pred_check
      _
    $region15: #{tpu_custom_call.1} parent=1 // pred_check_branch
      %44 = sbr.rel (0) target = $region17
    $region16: #{tpu_custom_call.1} parent=1 // pred_region
      _
    $region17: #{tpu_custom_call.1} parent=1 // pred_fallthru
      _
    // Predicated region
    $region18: #{tpu_custom_call.1} parent=1 // pred_check
      _
    $region19: #{tpu_custom_call.1} parent=1 // pred_check_branch
      %46 = sbr.rel (0) target = $region21
    $region20: #{tpu_custom_call.1} parent=1 // pred_region
      _
    $region21: #{tpu_custom_call.1} parent=1 // pred_fallthru
      _
    %47 = vsyncpa [#allocation3], 1

</llo_original>
